<compile_context>
chip_gen: v7x
topology: tpu7x:2x2x1
jax: 0.10.0
libtpu: 0.0.40
codegen_flags: <defaults>
</compile_context>

<pallas_src>
import functools
import math

import jax
import jax.numpy as jnp
import numpy as np
from jax import lax
from jax.experimental import pallas as pl
from jax.experimental.pallas import tpu as pltpu


def _unpool3d_kernel(g_ref, tag_ref, o_ref, *, K):
    """One grid step builds one (B, 1, H_out, W_out) output depth-plane."""
    B, _, H, W_out = g_ref.shape
    kd = pl.program_id(2)                          # depth offset inside window

    g = g_ref[:, 0, :, :]                          # (B, H, W_out) values
    tag = tag_ref[:, 0, :, :]                      # (B, H, W_out) int32

    # plane_tags[b, kh, :] == kd*K + kh : the (kd, kh) a lane must match to be
    # placed in output row h*K + kh of this depth plane.
    plane_tags = lax.broadcasted_iota(jnp.int32, (B, K, W_out), 1) + kd * K

    for h in range(H):
        gh = g[:, h:h + 1, :]                      # (B, 1, W_out)
        th = tag[:, h:h + 1, :]                    # (B, 1, W_out)
        slab = jnp.where(th == plane_tags, gh, 0)  # (B, K, W_out)
        o_ref[:, 0, h * K:(h + 1) * K, :] = slab.astype(o_ref.dtype)


def crop_max_unpool3d(f_maps, indices, kernel_size, stride, padding=None):
    """Equivalent of CropMaxUnpool3d.forward (NCDHW in / NCDHW out)."""
    if stride != kernel_size:
        # TODO(synk): stride != kernel_size (overlapping / gapped unpool windows)
        # needs an accumulating output-placement variant; not implemented here.
        raise NotImplementedError(
            "Pallas CropMaxUnpool3d fast path requires stride == kernel_size")

    N, C, D, H, W = f_maps.shape
    K = int(kernel_size)
    D_out = (D - 1) * stride + K          # == D * K
    H_out = (H - 1) * stride + K          # == H * K
    W_out = (W - 1) * stride + K          # == W * K
    NC = N * C

    f4 = f_maps.reshape(NC, D, H, W)
    idx4 = indices.reshape(NC, D, H, W).astype(jnp.int32)

    # ---- index decomposition + lane interleave on the small input-sized arrays
    # (plain XLA; avoids integer div/mod and lane scatters inside the kernel).
    hw_out = H_out * W_out
    od = idx4 // hw_out
    rem = idx4 - od * hw_out
    oh = rem // W_out
    ow = rem - oh * W_out
    d_pos = jnp.arange(D, dtype=jnp.int32)[None, :, None, None]
    h_pos = jnp.arange(H, dtype=jnp.int32)[None, None, :, None]
    w_pos = jnp.arange(W, dtype=jnp.int32)[None, None, None, :]
    kd = od - d_pos * stride              # local offsets inside the K^3 window
    kh = oh - h_pos * stride
    kw = ow - w_pos * stride
    valid = ((kd >= 0) & (kd < K) & (kh >= 0) & (kh < K) & (kw >= 0) & (kw < K))
    # NOTE: out-of-window indices are dropped; MaxPool3d-produced indices with
    # stride == kernel_size are always in-window.
    lane = jnp.arange(K, dtype=jnp.int32)
    g = jnp.where((kw[..., None] == lane) & valid[..., None],
                  f4[..., None], 0)
    g = g.reshape(NC, D, H, W_out).astype(f_maps.dtype)
    tag = jnp.broadcast_to((kd * K + kh)[..., None], (NC, D, H, W, K))
    tag = tag.reshape(NC, D, H, W_out).astype(jnp.int32)

    # ---- Pallas call: grid over (row tiles, input depth, depth offset in window).
    TNC = math.gcd(NC, 8)                 # batch several (n, c) maps per step
    grid = (NC // TNC, D, K)

    out_elems = NC * D_out * H_out * W_out
    itemsize = jnp.dtype(f_maps.dtype).itemsize
    cost = pl.CostEstimate(
        flops=out_elems,                  # ~1 select per output element
        transcendentals=0,
        bytes_accessed=int(g.size * g.dtype.itemsize + tag.size * 4
                           + out_elems * itemsize),
    )

    out4 = pl.pallas_call(
        functools.partial(_unpool3d_kernel, K=K),
        out_shape=jax.ShapeDtypeStruct((NC, D_out, H_out, W_out), f_maps.dtype),
        grid_spec=pltpu.PrefetchScalarGridSpec(
            num_scalar_prefetch=0,
            grid=grid,
            in_specs=[
                pl.BlockSpec((TNC, 1, H, W_out), lambda i, d, k: (i, d, 0, 0)),
                pl.BlockSpec((TNC, 1, H, W_out), lambda i, d, k: (i, d, 0, 0)),
            ],
            out_specs=pl.BlockSpec((TNC, 1, H_out, W_out),
                                   lambda i, d, k: (i, d * K + k, 0, 0)),
        ),
        compiler_params=pltpu.CompilerParams(
            dimension_semantics=("parallel", "parallel", "arbitrary")),
        cost_estimate=cost,
    )(g, tag)

    out = out4.reshape(N, C, D_out, H_out, W_out)

    if padding is not None:
        # Matches the PyTorch module: padding[4] crops D, padding[2] crops H,
        # padding[0] crops W.
        x1 = int(padding[4]); y1 = int(padding[2]); z1 = int(padding[0])
        # TODO(synk): fold the crop into the kernel's out_specs index_map to save
        # one extra pass over the (dominant) output tensor.
        out = out[:, :, x1:, y1:, z1:]
    return out


def _reference(f_maps, indices, kernel_size, stride, padding=None):
    """Pure-JAX reference (row-wise scatter) for correctness checking."""
    N, C, D, H, W = f_maps.shape
    D_out = (D - 1) * stride + kernel_size
    H_out = (H - 1) * stride + kernel_size
    W_out = (W - 1) * stride + kernel_size
    Q = D_out * H_out * W_out
    R = N * C
    f2 = f_maps.reshape(R, -1)
    i2 = indices.reshape(R, -1)
    out2 = jnp.zeros((R, Q), f_maps.dtype)
    out2 = out2.at[jnp.arange(R)[:, None], i2].set(f2)
    out = out2.reshape(N, C, D_out, H_out, W_out)
    if padding is not None:
        out = out[:, :, int(padding[4]):, int(padding[2]):, int(padding[0]):]
    return out


if __name__ == "__main__":
    key = jax.random.PRNGKey(0)
    N, C, D, H, W = 2, 4, 8, 8, 8
    kernel_size = stride = 2
    K = kernel_size
    D_out = (D - 1) * stride + K        # 16
    H_out = (H - 1) * stride + K        # 16
    W_out = (W - 1) * stride + K        # 16

    k_f, k_rd, k_rh, k_rw = jax.random.split(key, 4)
    f_maps = jax.random.normal(k_f, (N, C, D, H, W), dtype=jnp.float32)

    # Build valid MaxPool3d-style indices: each input element scatters to a
    # unique location inside its own (K x K x K) output window.
    rd = jax.random.randint(k_rd, (N, C, D, H, W), 0, K)
    rh = jax.random.randint(k_rh, (N, C, D, H, W), 0, K)
    rw = jax.random.randint(k_rw, (N, C, D, H, W), 0, K)
    od = jnp.arange(D)[:, None, None] * stride + rd
    oh = jnp.arange(H)[None, :, None] * stride + rh
    ow = jnp.arange(W)[None, None, :] * stride + rw
    indices = ((od * H_out + oh) * W_out + ow).astype(jnp.int32)

    padding = (1, 0, 2, 0, 3, 0)        # crops: W by 1, H by 2, D by 3

    out = crop_max_unpool3d(f_maps, indices, kernel_size, stride, padding)
    out = jax.block_until_ready(out)
    ref = _reference(f_maps, indices, kernel_size, stride, padding)
    assert out.shape == (N, C, D_out - 3, H_out - 2, W_out - 1), out.shape
    np.testing.assert_allclose(np.asarray(out), np.asarray(ref),
                               rtol=1e-6, atol=1e-6)

    # also exercise the no-padding path
    out_nopad = jax.block_until_ready(
        crop_max_unpool3d(f_maps, indices, kernel_size, stride, None))
    assert out_nopad.shape == (N, C, D_out, H_out, W_out)
    ref_nopad = _reference(f_maps, indices, kernel_size, stride, None)
    np.testing.assert_allclose(np.asarray(out_nopad), np.asarray(ref_nopad),
                               rtol=1e-6, atol=1e-6)

    print("KERNEL_OK")
</pallas_src>

<mosaic_0001>
module attributes {stable_mosaic.version = 11 : i64} {
  func.func @_unpool3d_kernel(%arg0: i32, %arg1: i32, %arg2: i32, %arg3: memref<8x1x8x16xf32, #tpu.memory_space<vmem>>, %arg4: memref<8x1x8x16xi32, #tpu.memory_space<vmem>>, %arg5: memref<8x1x16x16xf32, #tpu.memory_space<vmem>>) attributes {dimension_semantics = [#tpu.dimension_semantics<parallel>, #tpu.dimension_semantics<parallel>, #tpu.dimension_semantics<arbitrary>], iteration_bounds = array<i64: 1, 8, 2>, scalar_prefetch = 0 : i64, scratch_operands = 0 : i64, tpu.core_type = #tpu.core_type<tc>, window_params = [{transform_indices = @transform_0, window_bounds = array<i64: 8, 1, 8, 16>}, {transform_indices = @transform_1, window_bounds = array<i64: 8, 1, 8, 16>}, {transform_indices = @transform_2, window_bounds = array<i64: 8, 1, 16, 16>}]} {
    %c0 = arith.constant 0 : index
    %c0_0 = arith.constant 0 : index
    %c0_1 = arith.constant 0 : index
    %c0_2 = arith.constant 0 : index
    %0 = vector.load %arg3[%c0, %c0_0, %c0_1, %c0_2] : memref<8x1x8x16xf32, #tpu.memory_space<vmem>>, vector<8x1x8x16xf32>
    %1 = vector.shape_cast %0 : vector<8x1x8x16xf32> to vector<8x8x16xf32>
    %c0_3 = arith.constant 0 : index
    %c0_4 = arith.constant 0 : index
    %c0_5 = arith.constant 0 : index
    %c0_6 = arith.constant 0 : index
    %2 = vector.load %arg4[%c0_3, %c0_4, %c0_5, %c0_6] : memref<8x1x8x16xi32, #tpu.memory_space<vmem>>, vector<8x1x8x16xi32>
    %3 = vector.shape_cast %2 : vector<8x1x8x16xi32> to vector<8x8x16xi32>
    %4 = tpu.iota {dimensions = array<i32: 1>} : vector<8x2x16xi32>
    %c2_i32 = arith.constant 2 : i32
    %5 = arith.muli %arg2, %c2_i32 : i32
    %6 = vector.broadcast %5 : i32 to vector<8x2x16xi32>
    %7 = arith.addi %4, %6 : vector<8x2x16xi32>
    %8 = vector.extract_strided_slice %1 {offsets = [0, 0, 0], sizes = [8, 1, 16], strides = [1, 1, 1]} : vector<8x8x16xf32> to vector<8x1x16xf32>
    %9 = vector.extract_strided_slice %3 {offsets = [0, 0, 0], sizes = [8, 1, 16], strides = [1, 1, 1]} : vector<8x8x16xi32> to vector<8x1x16xi32>
    %10 = vector.broadcast %9 : vector<8x1x16xi32> to vector<8x2x16xi32>
    %11 = arith.cmpi eq, %10, %7 : vector<8x2x16xi32>
    %c0_i32 = arith.constant 0 : i32
    %12 = arith.sitofp %c0_i32 : i32 to f32
    %13 = vector.shape_cast %8 : vector<8x1x16xf32> to vector<8x1x16xf32>
    %14 = vector.broadcast %13 : vector<8x1x16xf32> to vector<8x2x16xf32>
    %15 = vector.broadcast %12 : f32 to vector<8x2x16xf32>
    %16 = arith.select %11, %14, %15 : vector<8x2x16xi1>, vector<8x2x16xf32>
    %c0_7 = arith.constant 0 : index
    %c0_8 = arith.constant 0 : index
    %c0_9 = arith.constant 0 : index
    %c0_10 = arith.constant 0 : index
    %17 = vector.load %arg5[%c0_7, %c0_8, %c0_9, %c0_10] : memref<8x1x16x16xf32, #tpu.memory_space<vmem>>, vector<8x1x2x16xf32>
    %18 = vector.shape_cast %17 : vector<8x1x2x16xf32> to vector<8x2x16xf32>
    %19 = vector.shape_cast %16 : vector<8x2x16xf32> to vector<8x1x2x16xf32>
    tpu.vector_store %arg5[%c0_7, %c0_8, %c0_9, %c0_10], %19 {strides = array<i32>} : memref<8x1x16x16xf32, #tpu.memory_space<vmem>>, vector<8x1x2x16xf32>,
    %20 = vector.extract_strided_slice %1 {offsets = [0, 1, 0], sizes = [8, 1, 16], strides = [1, 1, 1]} : vector<8x8x16xf32> to vector<8x1x16xf32>
    %21 = vector.extract_strided_slice %3 {offsets = [0, 1, 0], sizes = [8, 1, 16], strides = [1, 1, 1]} : vector<8x8x16xi32> to vector<8x1x16xi32>
    %22 = vector.broadcast %21 : vector<8x1x16xi32> to vector<8x2x16xi32>
    %23 = arith.cmpi eq, %22, %7 : vector<8x2x16xi32>
    %c0_i32_11 = arith.constant 0 : i32
    %24 = arith.sitofp %c0_i32_11 : i32 to f32
    %25 = vector.shape_cast %20 : vector<8x1x16xf32> to vector<8x1x16xf32>
    %26 = vector.broadcast %25 : vector<8x1x16xf32> to vector<8x2x16xf32>
    %27 = vector.broadcast %24 : f32 to vector<8x2x16xf32>
    %28 = arith.select %23, %26, %27 : vector<8x2x16xi1>, vector<8x2x16xf32>
    %c0_12 = arith.constant 0 : index
    %c0_13 = arith.constant 0 : index
    %c2 = arith.constant 2 : index
    %c0_14 = arith.constant 0 : index
    %29 = vector.load %arg5[%c0_12, %c0_13, %c2, %c0_14] : memref<8x1x16x16xf32, #tpu.memory_space<vmem>>, vector<8x1x2x16xf32>
    %30 = vector.shape_cast %29 : vector<8x1x2x16xf32> to vector<8x2x16xf32>
    %31 = vector.shape_cast %28 : vector<8x2x16xf32> to vector<8x1x2x16xf32>
    tpu.vector_store %arg5[%c0_12, %c0_13, %c2, %c0_14], %31 {strides = array<i32>} : memref<8x1x16x16xf32, #tpu.memory_space<vmem>>, vector<8x1x2x16xf32>,
    %32 = vector.extract_strided_slice %1 {offsets = [0, 2, 0], sizes = [8, 1, 16], strides = [1, 1, 1]} : vector<8x8x16xf32> to vector<8x1x16xf32>
    %33 = vector.extract_strided_slice %3 {offsets = [0, 2, 0], sizes = [8, 1, 16], strides = [1, 1, 1]} : vector<8x8x16xi32> to vector<8x1x16xi32>
    %34 = vector.broadcast %33 : vector<8x1x16xi32> to vector<8x2x16xi32>
    %35 = arith.cmpi eq, %34, %7 : vector<8x2x16xi32>
    %c0_i32_15 = arith.constant 0 : i32
    %36 = arith.sitofp %c0_i32_15 : i32 to f32
    %37 = vector.shape_cast %32 : vector<8x1x16xf32> to vector<8x1x16xf32>
    %38 = vector.broadcast %37 : vector<8x1x16xf32> to vector<8x2x16xf32>
    %39 = vector.broadcast %36 : f32 to vector<8x2x16xf32>
    %40 = arith.select %35, %38, %39 : vector<8x2x16xi1>, vector<8x2x16xf32>
    %c0_16 = arith.constant 0 : index
    %c0_17 = arith.constant 0 : index
    %c4 = arith.constant 4 : index
    %c0_18 = arith.constant 0 : index
    %41 = vector.load %arg5[%c0_16, %c0_17, %c4, %c0_18] : memref<8x1x16x16xf32, #tpu.memory_space<vmem>>, vector<8x1x2x16xf32>
    %42 = vector.shape_cast %41 : vector<8x1x2x16xf32> to vector<8x2x16xf32>
    %43 = vector.shape_cast %40 : vector<8x2x16xf32> to vector<8x1x2x16xf32>
    tpu.vector_store %arg5[%c0_16, %c0_17, %c4, %c0_18], %43 {strides = array<i32>} : memref<8x1x16x16xf32, #tpu.memory_space<vmem>>, vector<8x1x2x16xf32>,
    %44 = vector.extract_strided_slice %1 {offsets = [0, 3, 0], sizes = [8, 1, 16], strides = [1, 1, 1]} : vector<8x8x16xf32> to vector<8x1x16xf32>
    %45 = vector.extract_strided_slice %3 {offsets = [0, 3, 0], sizes = [8, 1, 16], strides = [1, 1, 1]} : vector<8x8x16xi32> to vector<8x1x16xi32>
    %46 = vector.broadcast %45 : vector<8x1x16xi32> to vector<8x2x16xi32>
    %47 = arith.cmpi eq, %46, %7 : vector<8x2x16xi32>
    %c0_i32_19 = arith.constant 0 : i32
    %48 = arith.sitofp %c0_i32_19 : i32 to f32
    %49 = vector.shape_cast %44 : vector<8x1x16xf32> to vector<8x1x16xf32>
    %50 = vector.broadcast %49 : vector<8x1x16xf32> to vector<8x2x16xf32>
    %51 = vector.broadcast %48 : f32 to vector<8x2x16xf32>
    %52 = arith.select %47, %50, %51 : vector<8x2x16xi1>, vector<8x2x16xf32>
    %c0_20 = arith.constant 0 : index
    %c0_21 = arith.constant 0 : index
    %c6 = arith.constant 6 : index
    %c0_22 = arith.constant 0 : index
    %53 = vector.load %arg5[%c0_20, %c0_21, %c6, %c0_22] : memref<8x1x16x16xf32, #tpu.memory_space<vmem>>, vector<8x1x2x16xf32>
    %54 = vector.shape_cast %53 : vector<8x1x2x16xf32> to vector<8x2x16xf32>
    %55 = vector.shape_cast %52 : vector<8x2x16xf32> to vector<8x1x2x16xf32>
    tpu.vector_store %arg5[%c0_20, %c0_21, %c6, %c0_22], %55 {strides = array<i32>} : memref<8x1x16x16xf32, #tpu.memory_space<vmem>>, vector<8x1x2x16xf32>,
    %56 = vector.extract_strided_slice %1 {offsets = [0, 4, 0], sizes = [8, 1, 16], strides = [1, 1, 1]} : vector<8x8x16xf32> to vector<8x1x16xf32>
    %57 = vector.extract_strided_slice %3 {offsets = [0, 4, 0], sizes = [8, 1, 16], strides = [1, 1, 1]} : vector<8x8x16xi32> to vector<8x1x16xi32>
    %58 = vector.broadcast %57 : vector<8x1x16xi32> to vector<8x2x16xi32>
    %59 = arith.cmpi eq, %58, %7 : vector<8x2x16xi32>
    %c0_i32_23 = arith.constant 0 : i32
    %60 = arith.sitofp %c0_i32_23 : i32 to f32
    %61 = vector.shape_cast %56 : vector<8x1x16xf32> to vector<8x1x16xf32>
    %62 = vector.broadcast %61 : vector<8x1x16xf32> to vector<8x2x16xf32>
    %63 = vector.broadcast %60 : f32 to vector<8x2x16xf32>
    %64 = arith.select %59, %62, %63 : vector<8x2x16xi1>, vector<8x2x16xf32>
    %c0_24 = arith.constant 0 : index
    %c0_25 = arith.constant 0 : index
    %c8 = arith.constant 8 : index
    %c0_26 = arith.constant 0 : index
    %65 = vector.load %arg5[%c0_24, %c0_25, %c8, %c0_26] : memref<8x1x16x16xf32, #tpu.memory_space<vmem>>, vector<8x1x2x16xf32>
    %66 = vector.shape_cast %65 : vector<8x1x2x16xf32> to vector<8x2x16xf32>
    %67 = vector.shape_cast %64 : vector<8x2x16xf32> to vector<8x1x2x16xf32>
    tpu.vector_store %arg5[%c0_24, %c0_25, %c8, %c0_26], %67 {strides = array<i32>} : memref<8x1x16x16xf32, #tpu.memory_space<vmem>>, vector<8x1x2x16xf32>,
    %68 = vector.extract_strided_slice %1 {offsets = [0, 5, 0], sizes = [8, 1, 16], strides = [1, 1, 1]} : vector<8x8x16xf32> to vector<8x1x16xf32>
    %69 = vector.extract_strided_slice %3 {offsets = [0, 5, 0], sizes = [8, 1, 16], strides = [1, 1, 1]} : vector<8x8x16xi32> to vector<8x1x16xi32>
    %70 = vector.broadcast %69 : vector<8x1x16xi32> to vector<8x2x16xi32>
    %71 = arith.cmpi eq, %70, %7 : vector<8x2x16xi32>
    %c0_i32_27 = arith.constant 0 : i32
    %72 = arith.sitofp %c0_i32_27 : i32 to f32
    %73 = vector.shape_cast %68 : vector<8x1x16xf32> to vector<8x1x16xf32>
    %74 = vector.broadcast %73 : vector<8x1x16xf32> to vector<8x2x16xf32>
    %75 = vector.broadcast %72 : f32 to vector<8x2x16xf32>
    %76 = arith.select %71, %74, %75 : vector<8x2x16xi1>, vector<8x2x16xf32>
    %c0_28 = arith.constant 0 : index
    %c0_29 = arith.constant 0 : index
    %c10 = arith.constant 10 : index
    %c0_30 = arith.constant 0 : index
    %77 = vector.load %arg5[%c0_28, %c0_29, %c10, %c0_30] : memref<8x1x16x16xf32, #tpu.memory_space<vmem>>, vector<8x1x2x16xf32>
    %78 = vector.shape_cast %77 : vector<8x1x2x16xf32> to vector<8x2x16xf32>
    %79 = vector.shape_cast %76 : vector<8x2x16xf32> to vector<8x1x2x16xf32>
    tpu.vector_store %arg5[%c0_28, %c0_29, %c10, %c0_30], %79 {strides = array<i32>} : memref<8x1x16x16xf32, #tpu.memory_space<vmem>>, vector<8x1x2x16xf32>,
    %80 = vector.extract_strided_slice %1 {offsets = [0, 6, 0], sizes = [8, 1, 16], strides = [1, 1, 1]} : vector<8x8x16xf32> to vector<8x1x16xf32>
    %81 = vector.extract_strided_slice %3 {offsets = [0, 6, 0], sizes = [8, 1, 16], strides = [1, 1, 1]} : vector<8x8x16xi32> to vector<8x1x16xi32>
    %82 = vector.broadcast %81 : vector<8x1x16xi32> to vector<8x2x16xi32>
    %83 = arith.cmpi eq, %82, %7 : vector<8x2x16xi32>
    %c0_i32_31 = arith.constant 0 : i32
    %84 = arith.sitofp %c0_i32_31 : i32 to f32
    %85 = vector.shape_cast %80 : vector<8x1x16xf32> to vector<8x1x16xf32>
    %86 = vector.broadcast %85 : vector<8x1x16xf32> to vector<8x2x16xf32>
    %87 = vector.broadcast %84 : f32 to vector<8x2x16xf32>
    %88 = arith.select %83, %86, %87 : vector<8x2x16xi1>, vector<8x2x16xf32>
    %c0_32 = arith.constant 0 : index
    %c0_33 = arith.constant 0 : index
    %c12 = arith.constant 12 : index
    %c0_34 = arith.constant 0 : index
    %89 = vector.load %arg5[%c0_32, %c0_33, %c12, %c0_34] : memref<8x1x16x16xf32, #tpu.memory_space<vmem>>, vector<8x1x2x16xf32>
    %90 = vector.shape_cast %89 : vector<8x1x2x16xf32> to vector<8x2x16xf32>
    %91 = vector.shape_cast %88 : vector<8x2x16xf32> to vector<8x1x2x16xf32>
    tpu.vector_store %arg5[%c0_32, %c0_33, %c12, %c0_34], %91 {strides = array<i32>} : memref<8x1x16x16xf32, #tpu.memory_space<vmem>>, vector<8x1x2x16xf32>,
    %92 = vector.extract_strided_slice %1 {offsets = [0, 7, 0], sizes = [8, 1, 16], strides = [1, 1, 1]} : vector<8x8x16xf32> to vector<8x1x16xf32>
    %93 = vector.extract_strided_slice %3 {offsets = [0, 7, 0], sizes = [8, 1, 16], strides = [1, 1, 1]} : vector<8x8x16xi32> to vector<8x1x16xi32>
    %94 = vector.broadcast %93 : vector<8x1x16xi32> to vector<8x2x16xi32>
    %95 = arith.cmpi eq, %94, %7 : vector<8x2x16xi32>
    %c0_i32_35 = arith.constant 0 : i32
    %96 = arith.sitofp %c0_i32_35 : i32 to f32
    %97 = vector.shape_cast %92 : vector<8x1x16xf32> to vector<8x1x16xf32>
    %98 = vector.broadcast %97 : vector<8x1x16xf32> to vector<8x2x16xf32>
    %99 = vector.broadcast %96 : f32 to vector<8x2x16xf32>
    %100 = arith.select %95, %98, %99 : vector<8x2x16xi1>, vector<8x2x16xf32>
    %c0_36 = arith.constant 0 : index
    %c0_37 = arith.constant 0 : index
    %c14 = arith.constant 14 : index
    %c0_38 = arith.constant 0 : index
    %101 = vector.load %arg5[%c0_36, %c0_37, %c14, %c0_38] : memref<8x1x16x16xf32, #tpu.memory_space<vmem>>, vector<8x1x2x16xf32>
    %102 = vector.shape_cast %101 : vector<8x1x2x16xf32> to vector<8x2x16xf32>
    %103 = vector.shape_cast %100 : vector<8x2x16xf32> to vector<8x1x2x16xf32>
    tpu.vector_store %arg5[%c0_36, %c0_37, %c14, %c0_38], %103 {strides = array<i32>} : memref<8x1x16x16xf32, #tpu.memory_space<vmem>>, vector<8x1x2x16xf32>,
    return
  }
  func.func @transform_0(%arg0: i32, %arg1: i32, %arg2: i32) -> (i32, i32, i32, i32) {
    %c0_i32 = arith.constant 0 : i32
    %c0_i32_0 = arith.constant 0 : i32
    %c0_i32_1 = arith.constant 0 : i32
    return %arg0, %arg1, %c0_i32, %c0_i32_0 : i32, i32, i32, i32
  }
  func.func @transform_1(%arg0: i32, %arg1: i32, %arg2: i32) -> (i32, i32, i32, i32) {
    %c0_i32 = arith.constant 0 : i32
    %c0_i32_0 = arith.constant 0 : i32
    %c0_i32_1 = arith.constant 0 : i32
    return %arg0, %arg1, %c0_i32, %c0_i32_0 : i32, i32, i32, i32
  }
  func.func @transform_2(%arg0: i32, %arg1: i32, %arg2: i32) -> (i32, i32, i32, i32) {
    %c2_i32 = arith.constant 2 : i32
    %0 = arith.muli %arg1, %c2_i32 : i32
    %1 = arith.addi %0, %arg2 : i32
    %c0_i32 = arith.constant 0 : i32
    %c0_i32_0 = arith.constant 0 : i32
    %c0_i32_1 = arith.constant 0 : i32
    return %arg0, %1, %c0_i32, %c0_i32_0 : i32, i32, i32, i32
  }
}

</mosaic_0001>

<llo_original>
// kernel: tpu_custom_call.1
$region0: #{tpu_custom_call.1}
  #allocation0 [shape = 'u32[]', space=smem, size = 0x4, offset = 0x4, fixed_abs, tag = 'smem constant byte address 0x4 - core index']
  #allocation1 [shape = 'u32[144,128]{1,0:T(1,128)}', space=vmem, size = 0x12000, scoped, tag = 'internal scratch']
  #allocation8 [shape = 's32[]', space=sflag, size = 0x4, offset = 0, fixed_abs, tag = 'sflag constant byte address 0x0 - dummy sync flag']
  %s0 = inlined_call_operand.hbm [shape: f32[8,8,8,16], index: 0, kind: input, shape index: {}]
  %s1 = inlined_call_operand.hbm [shape: s32[8,8,8,16], index: 1, kind: input, shape index: {}]
  %s2 = inlined_call_operand.hbm [shape: f32[8,16,16,16], index: 2, kind: output, shape index: {}]
  %s3 = sld [smem:[#allocation0]]
  $region49: #{tpu_custom_call.1} parent=0
    _
  %s5 = ssub.s32 1, %s3
  %s6 = scalar_select 0, %s5, %s3
  $region1: #{tpu_custom_call.1} parent=0
    #allocation2 [shape = 'u8[65536]{0}', space=vmem, size = 0x10000, scoped, tag = 'input window, operand 0']
    #allocation3 [shape = 's32[2]{0}', space=sflag, size = 0x8, scoped, tag = 'scoped memory for tpu_custom_call.1']
    #allocation4 [shape = 's32[2]{0}', space=sflag, size = 0x8, scoped, tag = 'scoped memory for tpu_custom_call.1']
    #allocation5 [shape = 'u8[65536]{0}', space=vmem, size = 0x10000, scoped, tag = 'input window, operand 1']
    #allocation6 [shape = 's32[2]{0}', space=sflag, size = 0x8, scoped, tag = 'scoped memory for tpu_custom_call.1']
    #allocation7 [shape = 'u8[131072]{0}', space=vmem, size = 0x20000, scoped, tag = 'output window, operand 0']
    %7 = vsyncpa [#allocation3], 0
    %s8 = scalar_lea.sflag [#allocation3], 1
    %9 = vsyncpa %s8, 0
    %10 = vsyncpa [#allocation6], 0
    %s11 = scalar_lea.sflag [#allocation6], 1
    %12 = vsyncpa %s11, 0
    %13 = vsyncpa [#allocation4], 0
    %s14 = scalar_lea.sflag [#allocation4], 1
    %15 = vsyncpa %s14, 0
    loop: start=0, step=1, limit=18
    $region2: #{tpu_custom_call.1} parent=1 // loop_pre_header
      _
    $region3: #{tpu_custom_call.1} parent=1 // loop_header
      %s17 = sphi 0, %s21
      %p18 = scmp.ge.s32.totalorder %s17, 18
      %s24 = sphi 0, %s43
      %s25 = sphi 0, %s39
      %s26 = sphi 0, %s35
      %s27 = sphi 0, %s24
      %s28 = sphi 0, %s25
      %s29 = sphi 0, %s26
      %s30 = sphi 0, %s27
      %s31 = sphi 0, %s28
      %s32 = sphi 0, %s29
      %s48 = sphi 0, %s50
      %s51 = sphi 0, %s48
      %s52 = sphi 0, %s51
      %s68 = sphi 0, %s52
      %s76 = sphi 0, %s78
      %s79 = sphi 0, %s76
      %s80 = sphi 0, %s79
      %s96 = sphi 0, %s80
      %s108 = sphi 0, %s110
      %s111 = sphi 0, %s108
      %s112 = sphi 0, %s111
      %s128 = sphi 0, %s112
    $region4: #{tpu_custom_call.1} parent=1 // loop_header_branch
      %20 = sbr.rel (%p18) target = $region8
    $region5: #{tpu_custom_call.1} parent=1 // loop_body
      %s22 = ssub.s32 %s17, 1
      %s23 = ssub.s32 %s17, 2
      %s33 = sadd.s32 1, %s26
      %p34 = scmp.ge.s32.totalorder %s33, 2
      %s35 = scalar_select %p34, 0, %s33
      %s36 = sadd.s32 1, %s25
      %s37 = scalar_select %p34, %s36, %s25
      %p38 = scmp.ge.s32.totalorder %s37, 8
      %s39 = scalar_select %p38, 0, %s37
      %s40 = sadd.s32 1, %s24
      %s41 = scalar_select %p38, %s40, %s24
      %p42 = scmp.ge.s32.totalorder %s41, 1
      %s43 = scalar_select %p42, 0, %s41
      %s44 = ssub.s32 %s24, %s43
      %s45 = ssub.s32 %s25, %s39
      %s46 = sor.u32 %s44, %s45
      %p47 = scmp.eq.s32.totalorder %s46, 0
      %s49 = sadd.s32 %s48, 1
      %s50 = scalar_select %p47, %s48, %s49
      %p53 = pneg %p47
      %p54 = scmp.eq.s32.totalorder %s17, 15
      %p55 = por %p53, %p54
      %p56 = scmp.ne.s32.totalorder %s48, %s51
      %p57 = scmp.eq.s32.totalorder %s17, 0
      %p58 = por %p56, %p57
      %p59 = scmp.ne.s32.totalorder %s48, %s51
      %p60 = scmp.eq.s32.totalorder %s22, 15
      %p61 = por %p59, %p60
      %p62 = scmp.ne.s32.totalorder %s51, %s52
      %p63 = scmp.eq.s32.totalorder %s22, 0
      %p64 = por %p62, %p63
      %p65 = scmp.ne.s32.totalorder %s51, %s52
      %p66 = scmp.eq.s32.totalorder %s23, 15
      %p67 = por %p65, %p66
      %p69 = scmp.ne.s32.totalorder %s52, %s68
      %p70 = scmp.eq.s32.totalorder %s23, 0
      %p71 = por %p69, %p70
      %s72 = ssub.s32 %s24, %s43
      %s73 = ssub.s32 %s25, %s39
      %s74 = sor.u32 %s72, %s73
      %p75 = scmp.eq.s32.totalorder %s74, 0
      %s77 = sadd.s32 %s76, 1
      %s78 = scalar_select %p75, %s76, %s77
      %p81 = pneg %p75
      %p82 = scmp.eq.s32.totalorder %s17, 15
      %p83 = por %p81, %p82
      %p84 = scmp.ne.s32.totalorder %s76, %s79
      %p85 = scmp.eq.s32.totalorder %s17, 0
      %p86 = por %p84, %p85
      %p87 = scmp.ne.s32.totalorder %s76, %s79
      %p88 = scmp.eq.s32.totalorder %s22, 15
      %p89 = por %p87, %p88
      %p90 = scmp.ne.s32.totalorder %s79, %s80
      %p91 = scmp.eq.s32.totalorder %s22, 0
      %p92 = por %p90, %p91
      %p93 = scmp.ne.s32.totalorder %s79, %s80
      %p94 = scmp.eq.s32.totalorder %s23, 15
      %p95 = por %p93, %p94
      %p97 = scmp.ne.s32.totalorder %s80, %s96
      %p98 = scmp.eq.s32.totalorder %s23, 0
      %p99 = por %p97, %p98
      %s100 = smul.u32 %s25, 2
      %s101 = sadd.s32 %s100, %s26
      %s102 = smul.u32 %s39, 2
      %s103 = sadd.s32 %s102, %s35
      %s104 = ssub.s32 %s24, %s43
      %s105 = ssub.s32 %s101, %s103
      %s106 = sor.u32 %s104, %s105
      %p107 = scmp.eq.s32.totalorder %s106, 0
      %s109 = sadd.s32 %s108, 1
      %s110 = scalar_select %p107, %s108, %s109
      %p113 = pneg %p107
      %p114 = scmp.eq.s32.totalorder %s17, 15
      %p115 = por %p113, %p114
      %p116 = scmp.ne.s32.totalorder %s108, %s111
      %p117 = scmp.eq.s32.totalorder %s17, 0
      %p118 = por %p116, %p117
      %p119 = scmp.ne.s32.totalorder %s108, %s111
      %p120 = scmp.eq.s32.totalorder %s22, 15
      %p121 = por %p119, %p120
      %p122 = scmp.ne.s32.totalorder %s111, %s112
      %p123 = scmp.eq.s32.totalorder %s22, 0
      %p124 = por %p122, %p123
      %p125 = scmp.ne.s32.totalorder %s111, %s112
      %p126 = scmp.eq.s32.totalorder %s23, 15
      %p127 = por %p125, %p126
      %p129 = scmp.ne.s32.totalorder %s112, %s128
      %p130 = scmp.eq.s32.totalorder %s23, 0
      %p131 = por %p129, %p130
      %p132 = scmp.le.s32.totalorder 1, %s17
      %p133 = scmp.lt.s32.totalorder %s17, 17
      %p134 = pnand %p132, %p133
      %p135 = pneg %p134
      // Predicated region
      $region9: #{tpu_custom_call.1} parent=5 // pred_check
        _
      $region10: #{tpu_custom_call.1} parent=5 // pred_check_branch
        %137 = sbr.rel (%p134) target = $region12
      $region11: #{tpu_custom_call.1} parent=5 // pred_region
        %s138 = ssub.s32 %s17, 1
      $region12: #{tpu_custom_call.1} parent=5 // pred_fallthru
        _
      %p139 = scmp.lt.s32.totalorder %s17, 16
      // Predicated region
      $region13: #{tpu_custom_call.1} parent=5 // pred_check
        %p140 = pneg %p139
      $region14: #{tpu_custom_call.1} parent=5 // pred_check_branch
        %142 = sbr.rel (%p140) target = $region16
      $region15: #{tpu_custom_call.1} parent=5 // pred_region
        // Predicated region
        $region17: #{tpu_custom_call.1} parent=15 // pred_check
          %p143 = pneg %p58
        $region18: #{tpu_custom_call.1} parent=15 // pred_check_branch
          %145 = sbr.rel (%p143) target = $region20
        $region19: #{tpu_custom_call.1} parent=15 // pred_region
          %s146 = sand.u32 %s48, 1
          %s147 = scalar_lea.sflag [#allocation3], %s146
          %s148 = sand.u32 %s48, 1
          %s149 = smul.addr %s148, 64
          %s150 = scalar_lea.vmem [#allocation2], %s149
          %s151 = smul.u32 8, %s24
          %s153 = ssub.s32 1024, 1024
          %154 = vsyncadd %s147, %s153
          %s155 = smul.addr %s151, 8
          %s156 = sadd.s32 %s25, %s155
          %s157 = smul.addr %s156, 128
          %s158 = scalar_lea.hbm %s0, %s157
          %s159 = sshll.u32 %s150, 4
          %s160 = int_to_ptr.vmem [resolvable:$true] %s159
          %165 = dma.hbm_to_vmem [thread:$0]  %s158, 1024, %s160, %s147, 1024, 128, 8
        $region20: #{tpu_custom_call.1} parent=15 // pred_fallthru
          _
        // Predicated region
        $region21: #{tpu_custom_call.1} parent=15 // pred_check
          %p166 = pneg %p86
        $region22: #{tpu_custom_call.1} parent=15 // pred_check_branch
          %168 = sbr.rel (%p166) target = $region24
        $region23: #{tpu_custom_call.1} parent=15 // pred_region
          %s169 = sand.u32 %s76, 1
          %s170 = scalar_lea.sflag [#allocation6], %s169
          %s171 = sand.u32 %s76, 1
          %s172 = smul.addr %s171, 64
          %s173 = scalar_lea.vmem [#allocation5], %s172
          %s174 = smul.u32 8, %s24
          %s176 = ssub.s32 1024, 1024
          %177 = vsyncadd %s170, %s176
          %s178 = smul.addr %s174, 8
          %s179 = sadd.s32 %s25, %s178
          %s180 = smul.addr %s179, 128
          %s181 = scalar_lea.hbm %s1, %s180
          %s182 = sshll.u32 %s173, 4
          %s183 = int_to_ptr.vmem [resolvable:$true] %s182
          %188 = dma.hbm_to_vmem [thread:$0]  %s181, 1024, %s183, %s170, 1024, 128, 8
        $region24: #{tpu_custom_call.1} parent=15 // pred_fallthru
          _
      $region16: #{tpu_custom_call.1} parent=5 // pred_fallthru
        _
      %p189 = scmp.le.s32.totalorder 1, %s17
      %p190 = scmp.lt.s32.totalorder %s17, 17
      %p191 = pnand %p189, %p190
      %p192 = pneg %p191
      // Predicated region
      $region25: #{tpu_custom_call.1} parent=5 // pred_check
        _
      $region26: #{tpu_custom_call.1} parent=5 // pred_check_branch
        %194 = sbr.rel (%p191) target = $region28
      $region27: #{tpu_custom_call.1} parent=5 // pred_region
        %s195 = ssub.s32 %s17, 1
        %s196 = sand.u32 %s51, 1
        %s197 = scalar_lea.sflag [#allocation3], %s196
        %s198 = sand.u32 %s51, 1
        %s199 = smul.addr %s198, 64
        %s200 = scalar_lea.vmem [#allocation2], %s199
        // Predicated region
        $region29: #{tpu_custom_call.1} parent=27 // pred_check
          %p201 = pneg %p64
        $region30: #{tpu_custom_call.1} parent=27 // pred_check_branch
          %203 = sbr.rel (%p201) target = $region32
        $region31: #{tpu_custom_call.1} parent=27 // pred_region
          %204 = dma.done %s197, 1024
        $region32: #{tpu_custom_call.1} parent=27 // pred_fallthru
          _
        %s205 = sand.u32 %s79, 1
        %s206 = scalar_lea.sflag [#allocation6], %s205
        %s207 = sand.u32 %s79, 1
        %s208 = smul.addr %s207, 64
        %s209 = scalar_lea.vmem [#allocation5], %s208
        // Predicated region
        $region33: #{tpu_custom_call.1} parent=27 // pred_check
          %p210 = pneg %p92
        $region34: #{tpu_custom_call.1} parent=27 // pred_check_branch
          %212 = sbr.rel (%p210) target = $region36
        $region35: #{tpu_custom_call.1} parent=27 // pred_region
          %213 = dma.done %s206, 1024
        $region36: #{tpu_custom_call.1} parent=27 // pred_fallthru
          _
        %s214 = sand.u32 %s51, 1
        %s215 = scalar_lea.sflag [#allocation3], %s214
        %s216 = sand.u32 %s51, 1
        %s217 = smul.addr %s216, 64
        %s218 = scalar_lea.vmem [#allocation2], %s217
        %p219 = pneg %p64
        %p220 = pneg %p61
        %s221 = sand.u32 %s79, 1
        %s222 = scalar_lea.sflag [#allocation6], %s221
        %s223 = sand.u32 %s79, 1
        %s224 = smul.addr %s223, 64
        %s225 = scalar_lea.vmem [#allocation5], %s224
        %p226 = pneg %p92
        %p227 = pneg %p89
        %p228 = pneg %p124
        %p229 = pneg %p121
        %s230 = sand.u32 %s111, 1
        %s231 = scalar_lea.sflag [#allocation4], %s230
        %s232 = sand.u32 %s111, 1
        %s233 = smul.addr %s232, 128
        %s234 = scalar_lea.vmem [#allocation7], %s233
        %s235 = smul.u32 8, %s27
        %s236 = smul.u32 8, %s27
        %s237 = smul.u32 %s28, 2
        %s238 = sadd.s32 %s237, %s29
        %s239 = smul.u32 8, %s27
        %v240 = vld [vmem:[%s200] sm:$0xff]
        %v241 = vld [vmem:[%s200 + $0x8] sm:$0xff]
        %v242 = vld [vmem:[%s200 + $0x10] sm:$0xff]
        %v243 = vld [vmem:[%s200 + $0x18] sm:$0xff]
        %v244 = vld [vmem:[%s200 + $0x20] sm:$0xff]
        %v245 = vld [vmem:[%s200 + $0x28] sm:$0xff]
        %v246 = vld [vmem:[%s200 + $0x30] sm:$0xff]
        %v247 = vld [vmem:[%s200 + $0x38] sm:$0xff]
        %v248 = vld [vmem:[%s209] sm:$0xff]
        %v249 = vld [vmem:[%s209 + $0x8] sm:$0xff]
        %v250 = vld [vmem:[%s209 + $0x10] sm:$0xff]
        %v251 = vld [vmem:[%s209 + $0x18] sm:$0xff]
        %v252 = vld [vmem:[%s209 + $0x20] sm:$0xff]
        %v253 = vld [vmem:[%s209 + $0x28] sm:$0xff]
        %v254 = vld [vmem:[%s209 + $0x30] sm:$0xff]
        %v255 = vld [vmem:[%s209 + $0x38] sm:$0xff]
        %v256 = vlaneseq
        %v257 = vshrl.u32 %v256, 7
        %s258 = smul.u32 %s29, 2
        %v259 = vstv %s258
        %v260 = vadd.s32 %v257, %v259
        %v261 = vlaneseq
        %v262 = vshrl.u32 %v261, 7
        %v263 = vsub.s32 0, %v262
        %v264 = vrot.slane %v248, %v263
        %v265 = vlaneseq
        %v266 = vshrl.u32 %v265, 7
        %v267 = vsub.s32 0, %v266
        %v268 = vrot.slane %v249, %v267
        %v269 = vlaneseq
        %v270 = vshrl.u32 %v269, 7
        %v271 = vsub.s32 0, %v270
        %v272 = vrot.slane %v250, %v271
        %v273 = vlaneseq
        %v274 = vshrl.u32 %v273, 7
        %v275 = vsub.s32 0, %v274
        %v276 = vrot.slane %v251, %v275
        %v277 = vlaneseq
        %v278 = vshrl.u32 %v277, 7
        %v279 = vsub.s32 0, %v278
        %v280 = vrot.slane %v252, %v279
        %v281 = vlaneseq
        %v282 = vshrl.u32 %v281, 7
        %v283 = vsub.s32 0, %v282
        %v284 = vrot.slane %v253, %v283
        %v285 = vlaneseq
        %v286 = vshrl.u32 %v285, 7
        %v287 = vsub.s32 0, %v286
        %v288 = vrot.slane %v254, %v287
        %v289 = vlaneseq
        %v290 = vshrl.u32 %v289, 7
        %v291 = vsub.s32 0, %v290
        %v292 = vrot.slane %v255, %v291
        %vm293 = vcmp.eq.s32.totalorder %v264, %v260
        %vm294 = vcmp.eq.s32.totalorder %v268, %v260
        %vm295 = vcmp.eq.s32.totalorder %v272, %v260
        %vm296 = vcmp.eq.s32.totalorder %v276, %v260
        %vm297 = vcmp.eq.s32.totalorder %v280, %v260
        %vm298 = vcmp.eq.s32.totalorder %v284, %v260
        %vm299 = vcmp.eq.s32.totalorder %v288, %v260
        %vm300 = vcmp.eq.s32.totalorder %v292, %v260
        %v301 = vlaneseq
        %v302 = vshrl.u32 %v301, 7
        %v303 = vsub.s32 0, %v302
        %v304 = vrot.slane %v240, %v303
        %v305 = vlaneseq
        %v306 = vshrl.u32 %v305, 7
        %v307 = vsub.s32 0, %v306
        %v308 = vrot.slane %v241, %v307
        %v309 = vlaneseq
        %v310 = vshrl.u32 %v309, 7
        %v311 = vsub.s32 0, %v310
        %v312 = vrot.slane %v242, %v311
        %v313 = vlaneseq
        %v314 = vshrl.u32 %v313, 7
        %v315 = vsub.s32 0, %v314
        %v316 = vrot.slane %v243, %v315
        %v317 = vlaneseq
        %v318 = vshrl.u32 %v317, 7
        %v319 = vsub.s32 0, %v318
        %v320 = vrot.slane %v244, %v319
        %v321 = vlaneseq
        %v322 = vshrl.u32 %v321, 7
        %v323 = vsub.s32 0, %v322
        %v324 = vrot.slane %v245, %v323
        %v325 = vlaneseq
        %v326 = vshrl.u32 %v325, 7
        %v327 = vsub.s32 0, %v326
        %v328 = vrot.slane %v246, %v327
        %v329 = vlaneseq
        %v330 = vshrl.u32 %v329, 7
        %v331 = vsub.s32 0, %v330
        %v332 = vrot.slane %v247, %v331
        %v333 = vsel %vm293, %v304, 0.0
        %v334 = vsel %vm294, %v308, 0.0
        %v335 = vsel %vm295, %v312, 0.0
        %v336 = vsel %vm296, %v316, 0.0
        %v337 = vsel %vm297, %v320, 0.0
        %v338 = vsel %vm298, %v324, 0.0
        %v339 = vsel %vm299, %v328, 0.0
        %v340 = vsel %vm300, %v332, 0.0
        %vm341 = vcmask 123904
        %342 = vst.msk [vmem:[%s234] sm:$0x3] %vm341, %v333
        %343 = vst.msk [vmem:[%s234 + $0x10] sm:$0x3] %vm341, %v334
        %344 = vst.msk [vmem:[%s234 + $0x20] sm:$0x3] %vm341, %v335
        %345 = vst.msk [vmem:[%s234 + $0x30] sm:$0x3] %vm341, %v336
        %346 = vst.msk [vmem:[%s234 + $0x40] sm:$0x3] %vm341, %v337
        %347 = vst.msk [vmem:[%s234 + $0x50] sm:$0x3] %vm341, %v338
        %348 = vst.msk [vmem:[%s234 + $0x60] sm:$0x3] %vm341, %v339
        %349 = vst.msk [vmem:[%s234 + $0x70] sm:$0x3] %vm341, %v340
        %v350 = vlaneseq
        %v351 = vshrl.u32 %v350, 7
        %v352 = vsub.s32 1, %v351
        %v353 = vrot.slane %v248, %v352
        %v354 = vlaneseq
        %v355 = vshrl.u32 %v354, 7
        %v356 = vsub.s32 1, %v355
        %v357 = vrot.slane %v249, %v356
        %v358 = vlaneseq
        %v359 = vshrl.u32 %v358, 7
        %v360 = vsub.s32 1, %v359
        %v361 = vrot.slane %v250, %v360
        %v362 = vlaneseq
        %v363 = vshrl.u32 %v362, 7
        %v364 = vsub.s32 1, %v363
        %v365 = vrot.slane %v251, %v364
        %v366 = vlaneseq
        %v367 = vshrl.u32 %v366, 7
        %v368 = vsub.s32 1, %v367
        %v369 = vrot.slane %v252, %v368
        %v370 = vlaneseq
        %v371 = vshrl.u32 %v370, 7
        %v372 = vsub.s32 1, %v371
        %v373 = vrot.slane %v253, %v372
        %v374 = vlaneseq
        %v375 = vshrl.u32 %v374, 7
        %v376 = vsub.s32 1, %v375
        %v377 = vrot.slane %v254, %v376
        %v378 = vlaneseq
        %v379 = vshrl.u32 %v378, 7
        %v380 = vsub.s32 1, %v379
        %v381 = vrot.slane %v255, %v380
        %vm382 = vcmp.eq.s32.totalorder %v353, %v260
        %vm383 = vcmp.eq.s32.totalorder %v357, %v260
        %vm384 = vcmp.eq.s32.totalorder %v361, %v260
        %vm385 = vcmp.eq.s32.totalorder %v365, %v260
        %vm386 = vcmp.eq.s32.totalorder %v369, %v260
        %vm387 = vcmp.eq.s32.totalorder %v373, %v260
        %vm388 = vcmp.eq.s32.totalorder %v377, %v260
        %vm389 = vcmp.eq.s32.totalorder %v381, %v260
        %v390 = vlaneseq
        %v391 = vshrl.u32 %v390, 7
        %v392 = vsub.s32 1, %v391
        %v393 = vrot.slane %v240, %v392
        %v394 = vlaneseq
        %v395 = vshrl.u32 %v394, 7
        %v396 = vsub.s32 1, %v395
        %v397 = vrot.slane %v241, %v396
        %v398 = vlaneseq
        %v399 = vshrl.u32 %v398, 7
        %v400 = vsub.s32 1, %v399
        %v401 = vrot.slane %v242, %v400
        %v402 = vlaneseq
        %v403 = vshrl.u32 %v402, 7
        %v404 = vsub.s32 1, %v403
        %v405 = vrot.slane %v243, %v404
        %v406 = vlaneseq
        %v407 = vshrl.u32 %v406, 7
        %v408 = vsub.s32 1, %v407
        %v409 = vrot.slane %v244, %v408
        %v410 = vlaneseq
        %v411 = vshrl.u32 %v410, 7
        %v412 = vsub.s32 1, %v411
        %v413 = vrot.slane %v245, %v412
        %v414 = vlaneseq
        %v415 = vshrl.u32 %v414, 7
        %v416 = vsub.s32 1, %v415
        %v417 = vrot.slane %v246, %v416
        %v418 = vlaneseq
        %v419 = vshrl.u32 %v418, 7
        %v420 = vsub.s32 1, %v419
        %v421 = vrot.slane %v247, %v420
        %v422 = vsel %vm382, %v393, 0.0
        %v423 = vsel %vm383, %v397, 0.0
        %v424 = vsel %vm384, %v401, 0.0
        %v425 = vsel %vm385, %v405, 0.0
        %v426 = vsel %vm386, %v409, 0.0
        %v427 = vsel %vm387, %v413, 0.0
        %v428 = vsel %vm388, %v417, 0.0
        %v429 = vsel %vm389, %v421, 0.0
        %430 = vst.msk [vmem:[%s234 + $0x2] sm:$0x3] %vm341, %v422
        %431 = vst.msk [vmem:[%s234 + $0x12] sm:$0x3] %vm341, %v423
        %432 = vst.msk [vmem:[%s234 + $0x22] sm:$0x3] %vm341, %v424
        %433 = vst.msk [vmem:[%s234 + $0x32] sm:$0x3] %vm341, %v425
        %434 = vst.msk [vmem:[%s234 + $0x42] sm:$0x3] %vm341, %v426
        %435 = vst.msk [vmem:[%s234 + $0x52] sm:$0x3] %vm341, %v427
        %436 = vst.msk [vmem:[%s234 + $0x62] sm:$0x3] %vm341, %v428
        %437 = vst.msk [vmem:[%s234 + $0x72] sm:$0x3] %vm341, %v429
        %v438 = vlaneseq
        %v439 = vshrl.u32 %v438, 7
        %v440 = vsub.s32 2, %v439
        %v441 = vrot.slane %v248, %v440
        %v442 = vlaneseq
        %v443 = vshrl.u32 %v442, 7
        %v444 = vsub.s32 2, %v443
        %v445 = vrot.slane %v249, %v444
        %v446 = vlaneseq
        %v447 = vshrl.u32 %v446, 7
        %v448 = vsub.s32 2, %v447
        %v449 = vrot.slane %v250, %v448
        %v450 = vlaneseq
        %v451 = vshrl.u32 %v450, 7
        %v452 = vsub.s32 2, %v451
        %v453 = vrot.slane %v251, %v452
        %v454 = vlaneseq
        %v455 = vshrl.u32 %v454, 7
        %v456 = vsub.s32 2, %v455
        %v457 = vrot.slane %v252, %v456
        %v458 = vlaneseq
        %v459 = vshrl.u32 %v458, 7
        %v460 = vsub.s32 2, %v459
        %v461 = vrot.slane %v253, %v460
        %v462 = vlaneseq
        %v463 = vshrl.u32 %v462, 7
        %v464 = vsub.s32 2, %v463
        %v465 = vrot.slane %v254, %v464
        %v466 = vlaneseq
        %v467 = vshrl.u32 %v466, 7
        %v468 = vsub.s32 2, %v467
        %v469 = vrot.slane %v255, %v468
        %vm470 = vcmp.eq.s32.totalorder %v441, %v260
        %vm471 = vcmp.eq.s32.totalorder %v445, %v260
        %vm472 = vcmp.eq.s32.totalorder %v449, %v260
        %vm473 = vcmp.eq.s32.totalorder %v453, %v260
        %vm474 = vcmp.eq.s32.totalorder %v457, %v260
        %vm475 = vcmp.eq.s32.totalorder %v461, %v260
        %vm476 = vcmp.eq.s32.totalorder %v465, %v260
        %vm477 = vcmp.eq.s32.totalorder %v469, %v260
        %v478 = vlaneseq
        %v479 = vshrl.u32 %v478, 7
        %v480 = vsub.s32 2, %v479
        %v481 = vrot.slane %v240, %v480
        %v482 = vlaneseq
        %v483 = vshrl.u32 %v482, 7
        %v484 = vsub.s32 2, %v483
        %v485 = vrot.slane %v241, %v484
        %v486 = vlaneseq
        %v487 = vshrl.u32 %v486, 7
        %v488 = vsub.s32 2, %v487
        %v489 = vrot.slane %v242, %v488
        %v490 = vlaneseq
        %v491 = vshrl.u32 %v490, 7
        %v492 = vsub.s32 2, %v491
        %v493 = vrot.slane %v243, %v492
        %v494 = vlaneseq
        %v495 = vshrl.u32 %v494, 7
        %v496 = vsub.s32 2, %v495
        %v497 = vrot.slane %v244, %v496
        %v498 = vlaneseq
        %v499 = vshrl.u32 %v498, 7
        %v500 = vsub.s32 2, %v499
        %v501 = vrot.slane %v245, %v500
        %v502 = vlaneseq
        %v503 = vshrl.u32 %v502, 7
        %v504 = vsub.s32 2, %v503
        %v505 = vrot.slane %v246, %v504
        %v506 = vlaneseq
        %v507 = vshrl.u32 %v506, 7
        %v508 = vsub.s32 2, %v507
        %v509 = vrot.slane %v247, %v508
        %v510 = vsel %vm470, %v481, 0.0
        %v511 = vsel %vm471, %v485, 0.0
        %v512 = vsel %vm472, %v489, 0.0
        %v513 = vsel %vm473, %v493, 0.0
        %v514 = vsel %vm474, %v497, 0.0
        %v515 = vsel %vm475, %v501, 0.0
        %v516 = vsel %vm476, %v505, 0.0
        %v517 = vsel %vm477, %v509, 0.0
        %518 = vst.msk [vmem:[%s234 + $0x4] sm:$0x3] %vm341, %v510
        %519 = vst.msk [vmem:[%s234 + $0x14] sm:$0x3] %vm341, %v511
        %520 = vst.msk [vmem:[%s234 + $0x24] sm:$0x3] %vm341, %v512
        %521 = vst.msk [vmem:[%s234 + $0x34] sm:$0x3] %vm341, %v513
        %522 = vst.msk [vmem:[%s234 + $0x44] sm:$0x3] %vm341, %v514
        %523 = vst.msk [vmem:[%s234 + $0x54] sm:$0x3] %vm341, %v515
        %524 = vst.msk [vmem:[%s234 + $0x64] sm:$0x3] %vm341, %v516
        %525 = vst.msk [vmem:[%s234 + $0x74] sm:$0x3] %vm341, %v517
        %v526 = vlaneseq
        %v527 = vshrl.u32 %v526, 7
        %v528 = vsub.s32 3, %v527
        %v529 = vrot.slane %v248, %v528
        %v530 = vlaneseq
        %v531 = vshrl.u32 %v530, 7
        %v532 = vsub.s32 3, %v531
        %v533 = vrot.slane %v249, %v532
        %v534 = vlaneseq
        %v535 = vshrl.u32 %v534, 7
        %v536 = vsub.s32 3, %v535
        %v537 = vrot.slane %v250, %v536
        %v538 = vlaneseq
        %v539 = vshrl.u32 %v538, 7
        %v540 = vsub.s32 3, %v539
        %v541 = vrot.slane %v251, %v540
        %v542 = vlaneseq
        %v543 = vshrl.u32 %v542, 7
        %v544 = vsub.s32 3, %v543
        %v545 = vrot.slane %v252, %v544
        %v546 = vlaneseq
        %v547 = vshrl.u32 %v546, 7
        %v548 = vsub.s32 3, %v547
        %v549 = vrot.slane %v253, %v548
        %v550 = vlaneseq
        %v551 = vshrl.u32 %v550, 7
        %v552 = vsub.s32 3, %v551
        %v553 = vrot.slane %v254, %v552
        %v554 = vlaneseq
        %v555 = vshrl.u32 %v554, 7
        %v556 = vsub.s32 3, %v555
        %v557 = vrot.slane %v255, %v556
        %vm558 = vcmp.eq.s32.totalorder %v529, %v260
        %vm559 = vcmp.eq.s32.totalorder %v533, %v260
        %vm560 = vcmp.eq.s32.totalorder %v537, %v260
        %vm561 = vcmp.eq.s32.totalorder %v541, %v260
        %vm562 = vcmp.eq.s32.totalorder %v545, %v260
        %vm563 = vcmp.eq.s32.totalorder %v549, %v260
        %vm564 = vcmp.eq.s32.totalorder %v553, %v260
        %vm565 = vcmp.eq.s32.totalorder %v557, %v260
        %v566 = vlaneseq
        %v567 = vshrl.u32 %v566, 7
        %v568 = vsub.s32 3, %v567
        %v569 = vrot.slane %v240, %v568
        %v570 = vlaneseq
        %v571 = vshrl.u32 %v570, 7
        %v572 = vsub.s32 3, %v571
        %v573 = vrot.slane %v241, %v572
        %v574 = vlaneseq
        %v575 = vshrl.u32 %v574, 7
        %v576 = vsub.s32 3, %v575
        %v577 = vrot.slane %v242, %v576
        %v578 = vlaneseq
        %v579 = vshrl.u32 %v578, 7
        %v580 = vsub.s32 3, %v579
        %v581 = vrot.slane %v243, %v580
        %v582 = vlaneseq
        %v583 = vshrl.u32 %v582, 7
        %v584 = vsub.s32 3, %v583
        %v585 = vrot.slane %v244, %v584
        %v586 = vlaneseq
        %v587 = vshrl.u32 %v586, 7
        %v588 = vsub.s32 3, %v587
        %v589 = vrot.slane %v245, %v588
        %v590 = vlaneseq
        %v591 = vshrl.u32 %v590, 7
        %v592 = vsub.s32 3, %v591
        %v593 = vrot.slane %v246, %v592
        %v594 = vlaneseq
        %v595 = vshrl.u32 %v594, 7
        %v596 = vsub.s32 3, %v595
        %v597 = vrot.slane %v247, %v596
        %v598 = vsel %vm558, %v569, 0.0
        %v599 = vsel %vm559, %v573, 0.0
        %v600 = vsel %vm560, %v577, 0.0
        %v601 = vsel %vm561, %v581, 0.0
        %v602 = vsel %vm562, %v585, 0.0
        %v603 = vsel %vm563, %v589, 0.0
        %v604 = vsel %vm564, %v593, 0.0
        %v605 = vsel %vm565, %v597, 0.0
        %606 = vst.msk [vmem:[%s234 + $0x6] sm:$0x3] %vm341, %v598
        %607 = vst.msk [vmem:[%s234 + $0x16] sm:$0x3] %vm341, %v599
        %608 = vst.msk [vmem:[%s234 + $0x26] sm:$0x3] %vm341, %v600
        %609 = vst.msk [vmem:[%s234 + $0x36] sm:$0x3] %vm341, %v601
        %610 = vst.msk [vmem:[%s234 + $0x46] sm:$0x3] %vm341, %v602
        %611 = vst.msk [vmem:[%s234 + $0x56] sm:$0x3] %vm341, %v603
        %612 = vst.msk [vmem:[%s234 + $0x66] sm:$0x3] %vm341, %v604
        %613 = vst.msk [vmem:[%s234 + $0x76] sm:$0x3] %vm341, %v605
        %v614 = vlaneseq
        %v615 = vshrl.u32 %v614, 7
        %v616 = vsub.s32 4, %v615
        %v617 = vrot.slane %v248, %v616
        %v618 = vlaneseq
        %v619 = vshrl.u32 %v618, 7
        %v620 = vsub.s32 4, %v619
        %v621 = vrot.slane %v249, %v620
        %v622 = vlaneseq
        %v623 = vshrl.u32 %v622, 7
        %v624 = vsub.s32 4, %v623
        %v625 = vrot.slane %v250, %v624
        %v626 = vlaneseq
        %v627 = vshrl.u32 %v626, 7
        %v628 = vsub.s32 4, %v627
        %v629 = vrot.slane %v251, %v628
        %v630 = vlaneseq
        %v631 = vshrl.u32 %v630, 7
        %v632 = vsub.s32 4, %v631
        %v633 = vrot.slane %v252, %v632
        %v634 = vlaneseq
        %v635 = vshrl.u32 %v634, 7
        %v636 = vsub.s32 4, %v635
        %v637 = vrot.slane %v253, %v636
        %v638 = vlaneseq
        %v639 = vshrl.u32 %v638, 7
        %v640 = vsub.s32 4, %v639
        %v641 = vrot.slane %v254, %v640
        %v642 = vlaneseq
        %v643 = vshrl.u32 %v642, 7
        %v644 = vsub.s32 4, %v643
        %v645 = vrot.slane %v255, %v644
        %vm646 = vcmp.eq.s32.totalorder %v617, %v260
        %vm647 = vcmp.eq.s32.totalorder %v621, %v260
        %vm648 = vcmp.eq.s32.totalorder %v625, %v260
        %vm649 = vcmp.eq.s32.totalorder %v629, %v260
        %vm650 = vcmp.eq.s32.totalorder %v633, %v260
        %vm651 = vcmp.eq.s32.totalorder %v637, %v260
        %vm652 = vcmp.eq.s32.totalorder %v641, %v260
        %vm653 = vcmp.eq.s32.totalorder %v645, %v260
        %v654 = vlaneseq
        %v655 = vshrl.u32 %v654, 7
        %v656 = vsub.s32 4, %v655
        %v657 = vrot.slane %v240, %v656
        %v658 = vlaneseq
        %v659 = vshrl.u32 %v658, 7
        %v660 = vsub.s32 4, %v659
        %v661 = vrot.slane %v241, %v660
        %v662 = vlaneseq
        %v663 = vshrl.u32 %v662, 7
        %v664 = vsub.s32 4, %v663
        %v665 = vrot.slane %v242, %v664
        %v666 = vlaneseq
        %v667 = vshrl.u32 %v666, 7
        %v668 = vsub.s32 4, %v667
        %v669 = vrot.slane %v243, %v668
        %v670 = vlaneseq
        %v671 = vshrl.u32 %v670, 7
        %v672 = vsub.s32 4, %v671
        %v673 = vrot.slane %v244, %v672
        %v674 = vlaneseq
        %v675 = vshrl.u32 %v674, 7
        %v676 = vsub.s32 4, %v675
        %v677 = vrot.slane %v245, %v676
        %v678 = vlaneseq
        %v679 = vshrl.u32 %v678, 7
        %v680 = vsub.s32 4, %v679
        %v681 = vrot.slane %v246, %v680
        %v682 = vlaneseq
        %v683 = vshrl.u32 %v682, 7
        %v684 = vsub.s32 4, %v683
        %v685 = vrot.slane %v247, %v684
        %v686 = vsel %vm646, %v657, 0.0
        %v687 = vsel %vm647, %v661, 0.0
        %v688 = vsel %vm648, %v665, 0.0
        %v689 = vsel %vm649, %v669, 0.0
        %v690 = vsel %vm650, %v673, 0.0
        %v691 = vsel %vm651, %v677, 0.0
        %v692 = vsel %vm652, %v681, 0.0
        %v693 = vsel %vm653, %v685, 0.0
        %694 = vst.msk [vmem:[%s234 + $0x8] sm:$0x3] %vm341, %v686
        %695 = vst.msk [vmem:[%s234 + $0x18] sm:$0x3] %vm341, %v687
        %696 = vst.msk [vmem:[%s234 + $0x28] sm:$0x3] %vm341, %v688
        %697 = vst.msk [vmem:[%s234 + $0x38] sm:$0x3] %vm341, %v689
        %698 = vst.msk [vmem:[%s234 + $0x48] sm:$0x3] %vm341, %v690
        %699 = vst.msk [vmem:[%s234 + $0x58] sm:$0x3] %vm341, %v691
        %700 = vst.msk [vmem:[%s234 + $0x68] sm:$0x3] %vm341, %v692
        %701 = vst.msk [vmem:[%s234 + $0x78] sm:$0x3] %vm341, %v693
        %v702 = vlaneseq
        %v703 = vshrl.u32 %v702, 7
        %v704 = vsub.s32 5, %v703
        %v705 = vrot.slane %v248, %v704
        %v706 = vlaneseq
        %v707 = vshrl.u32 %v706, 7
        %v708 = vsub.s32 5, %v707
        %v709 = vrot.slane %v249, %v708
        %v710 = vlaneseq
        %v711 = vshrl.u32 %v710, 7
        %v712 = vsub.s32 5, %v711
        %v713 = vrot.slane %v250, %v712
        %v714 = vlaneseq
        %v715 = vshrl.u32 %v714, 7
        %v716 = vsub.s32 5, %v715
        %v717 = vrot.slane %v251, %v716
        %v718 = vlaneseq
        %v719 = vshrl.u32 %v718, 7
        %v720 = vsub.s32 5, %v719
        %v721 = vrot.slane %v252, %v720
        %v722 = vlaneseq
        %v723 = vshrl.u32 %v722, 7
        %v724 = vsub.s32 5, %v723
        %v725 = vrot.slane %v253, %v724
        %v726 = vlaneseq
        %v727 = vshrl.u32 %v726, 7
        %v728 = vsub.s32 5, %v727
        %v729 = vrot.slane %v254, %v728
        %v730 = vlaneseq
        %v731 = vshrl.u32 %v730, 7
        %v732 = vsub.s32 5, %v731
        %v733 = vrot.slane %v255, %v732
        %vm734 = vcmp.eq.s32.totalorder %v705, %v260
        %vm735 = vcmp.eq.s32.totalorder %v709, %v260
        %vm736 = vcmp.eq.s32.totalorder %v713, %v260
        %vm737 = vcmp.eq.s32.totalorder %v717, %v260
        %vm738 = vcmp.eq.s32.totalorder %v721, %v260
        %vm739 = vcmp.eq.s32.totalorder %v725, %v260
        %vm740 = vcmp.eq.s32.totalorder %v729, %v260
        %vm741 = vcmp.eq.s32.totalorder %v733, %v260
        %v742 = vlaneseq
        %v743 = vshrl.u32 %v742, 7
        %v744 = vsub.s32 5, %v743
        %v745 = vrot.slane %v240, %v744
        %v746 = vlaneseq
        %v747 = vshrl.u32 %v746, 7
        %v748 = vsub.s32 5, %v747
        %v749 = vrot.slane %v241, %v748
        %v750 = vlaneseq
        %v751 = vshrl.u32 %v750, 7
        %v752 = vsub.s32 5, %v751
        %v753 = vrot.slane %v242, %v752
        %v754 = vlaneseq
        %v755 = vshrl.u32 %v754, 7
        %v756 = vsub.s32 5, %v755
        %v757 = vrot.slane %v243, %v756
        %v758 = vlaneseq
        %v759 = vshrl.u32 %v758, 7
        %v760 = vsub.s32 5, %v759
        %v761 = vrot.slane %v244, %v760
        %v762 = vlaneseq
        %v763 = vshrl.u32 %v762, 7
        %v764 = vsub.s32 5, %v763
        %v765 = vrot.slane %v245, %v764
        %v766 = vlaneseq
        %v767 = vshrl.u32 %v766, 7
        %v768 = vsub.s32 5, %v767
        %v769 = vrot.slane %v246, %v768
        %v770 = vlaneseq
        %v771 = vshrl.u32 %v770, 7
        %v772 = vsub.s32 5, %v771
        %v773 = vrot.slane %v247, %v772
        %v774 = vsel %vm734, %v745, 0.0
        %v775 = vsel %vm735, %v749, 0.0
        %v776 = vsel %vm736, %v753, 0.0
        %v777 = vsel %vm737, %v757, 0.0
        %v778 = vsel %vm738, %v761, 0.0
        %v779 = vsel %vm739, %v765, 0.0
        %v780 = vsel %vm740, %v769, 0.0
        %v781 = vsel %vm741, %v773, 0.0
        %782 = vst.msk [vmem:[%s234 + $0xa] sm:$0x3] %vm341, %v774
        %783 = vst.msk [vmem:[%s234 + $0x1a] sm:$0x3] %vm341, %v775
        %784 = vst.msk [vmem:[%s234 + $0x2a] sm:$0x3] %vm341, %v776
        %785 = vst.msk [vmem:[%s234 + $0x3a] sm:$0x3] %vm341, %v777
        %786 = vst.msk [vmem:[%s234 + $0x4a] sm:$0x3] %vm341, %v778
        %787 = vst.msk [vmem:[%s234 + $0x5a] sm:$0x3] %vm341, %v779
        %788 = vst.msk [vmem:[%s234 + $0x6a] sm:$0x3] %vm341, %v780
        %789 = vst.msk [vmem:[%s234 + $0x7a] sm:$0x3] %vm341, %v781
        %v790 = vlaneseq
        %v791 = vshrl.u32 %v790, 7
        %v792 = vsub.s32 6, %v791
        %v793 = vrot.slane %v248, %v792
        %v794 = vlaneseq
        %v795 = vshrl.u32 %v794, 7
        %v796 = vsub.s32 6, %v795
        %v797 = vrot.slane %v249, %v796
        %v798 = vlaneseq
        %v799 = vshrl.u32 %v798, 7
        %v800 = vsub.s32 6, %v799
        %v801 = vrot.slane %v250, %v800
        %v802 = vlaneseq
        %v803 = vshrl.u32 %v802, 7
        %v804 = vsub.s32 6, %v803
        %v805 = vrot.slane %v251, %v804
        %v806 = vlaneseq
        %v807 = vshrl.u32 %v806, 7
        %v808 = vsub.s32 6, %v807
        %v809 = vrot.slane %v252, %v808
        %v810 = vlaneseq
        %v811 = vshrl.u32 %v810, 7
        %v812 = vsub.s32 6, %v811
        %v813 = vrot.slane %v253, %v812
        %v814 = vlaneseq
        %v815 = vshrl.u32 %v814, 7
        %v816 = vsub.s32 6, %v815
        %v817 = vrot.slane %v254, %v816
        %v818 = vlaneseq
        %v819 = vshrl.u32 %v818, 7
        %v820 = vsub.s32 6, %v819
        %v821 = vrot.slane %v255, %v820
        %vm822 = vcmp.eq.s32.totalorder %v793, %v260
        %vm823 = vcmp.eq.s32.totalorder %v797, %v260
        %vm824 = vcmp.eq.s32.totalorder %v801, %v260
        %vm825 = vcmp.eq.s32.totalorder %v805, %v260
        %vm826 = vcmp.eq.s32.totalorder %v809, %v260
        %vm827 = vcmp.eq.s32.totalorder %v813, %v260
        %vm828 = vcmp.eq.s32.totalorder %v817, %v260
        %vm829 = vcmp.eq.s32.totalorder %v821, %v260
        %v830 = vlaneseq
        %v831 = vshrl.u32 %v830, 7
        %v832 = vsub.s32 6, %v831
        %v833 = vrot.slane %v240, %v832
        %v834 = vlaneseq
        %v835 = vshrl.u32 %v834, 7
        %v836 = vsub.s32 6, %v835
        %v837 = vrot.slane %v241, %v836
        %v838 = vlaneseq
        %v839 = vshrl.u32 %v838, 7
        %v840 = vsub.s32 6, %v839
        %v841 = vrot.slane %v242, %v840
        %v842 = vlaneseq
        %v843 = vshrl.u32 %v842, 7
        %v844 = vsub.s32 6, %v843
        %v845 = vrot.slane %v243, %v844
        %v846 = vlaneseq
        %v847 = vshrl.u32 %v846, 7
        %v848 = vsub.s32 6, %v847
        %v849 = vrot.slane %v244, %v848
        %v850 = vlaneseq
        %v851 = vshrl.u32 %v850, 7
        %v852 = vsub.s32 6, %v851
        %v853 = vrot.slane %v245, %v852
        %v854 = vlaneseq
        %v855 = vshrl.u32 %v854, 7
        %v856 = vsub.s32 6, %v855
        %v857 = vrot.slane %v246, %v856
        %v858 = vlaneseq
        %v859 = vshrl.u32 %v858, 7
        %v860 = vsub.s32 6, %v859
        %v861 = vrot.slane %v247, %v860
        %v862 = vsel %vm822, %v833, 0.0
        %v863 = vsel %vm823, %v837, 0.0
        %v864 = vsel %vm824, %v841, 0.0
        %v865 = vsel %vm825, %v845, 0.0
        %v866 = vsel %vm826, %v849, 0.0
        %v867 = vsel %vm827, %v853, 0.0
        %v868 = vsel %vm828, %v857, 0.0
        %v869 = vsel %vm829, %v861, 0.0
        %870 = vst.msk [vmem:[%s234 + $0xc] sm:$0x3] %vm341, %v862
        %871 = vst.msk [vmem:[%s234 + $0x1c] sm:$0x3] %vm341, %v863
        %872 = vst.msk [vmem:[%s234 + $0x2c] sm:$0x3] %vm341, %v864
        %873 = vst.msk [vmem:[%s234 + $0x3c] sm:$0x3] %vm341, %v865
        %874 = vst.msk [vmem:[%s234 + $0x4c] sm:$0x3] %vm341, %v866
        %875 = vst.msk [vmem:[%s234 + $0x5c] sm:$0x3] %vm341, %v867
        %876 = vst.msk [vmem:[%s234 + $0x6c] sm:$0x3] %vm341, %v868
        %877 = vst.msk [vmem:[%s234 + $0x7c] sm:$0x3] %vm341, %v869
        %v878 = vlaneseq
        %v879 = vshrl.u32 %v878, 7
        %v880 = vsub.s32 7, %v879
        %v881 = vrot.slane %v248, %v880
        %v882 = vlaneseq
        %v883 = vshrl.u32 %v882, 7
        %v884 = vsub.s32 7, %v883
        %v885 = vrot.slane %v249, %v884
        %v886 = vlaneseq
        %v887 = vshrl.u32 %v886, 7
        %v888 = vsub.s32 7, %v887
        %v889 = vrot.slane %v250, %v888
        %v890 = vlaneseq
        %v891 = vshrl.u32 %v890, 7
        %v892 = vsub.s32 7, %v891
        %v893 = vrot.slane %v251, %v892
        %v894 = vlaneseq
        %v895 = vshrl.u32 %v894, 7
        %v896 = vsub.s32 7, %v895
        %v897 = vrot.slane %v252, %v896
        %v898 = vlaneseq
        %v899 = vshrl.u32 %v898, 7
        %v900 = vsub.s32 7, %v899
        %v901 = vrot.slane %v253, %v900
        %v902 = vlaneseq
        %v903 = vshrl.u32 %v902, 7
        %v904 = vsub.s32 7, %v903
        %v905 = vrot.slane %v254, %v904
        %v906 = vlaneseq
        %v907 = vshrl.u32 %v906, 7
        %v908 = vsub.s32 7, %v907
        %v909 = vrot.slane %v255, %v908
        %vm910 = vcmp.eq.s32.totalorder %v881, %v260
        %vm911 = vcmp.eq.s32.totalorder %v885, %v260
        %vm912 = vcmp.eq.s32.totalorder %v889, %v260
        %vm913 = vcmp.eq.s32.totalorder %v893, %v260
        %vm914 = vcmp.eq.s32.totalorder %v897, %v260
        %vm915 = vcmp.eq.s32.totalorder %v901, %v260
        %vm916 = vcmp.eq.s32.totalorder %v905, %v260
        %vm917 = vcmp.eq.s32.totalorder %v909, %v260
        %v918 = vlaneseq
        %v919 = vshrl.u32 %v918, 7
        %v920 = vsub.s32 7, %v919
        %v921 = vrot.slane %v240, %v920
        %v922 = vlaneseq
        %v923 = vshrl.u32 %v922, 7
        %v924 = vsub.s32 7, %v923
        %v925 = vrot.slane %v241, %v924
        %v926 = vlaneseq
        %v927 = vshrl.u32 %v926, 7
        %v928 = vsub.s32 7, %v927
        %v929 = vrot.slane %v242, %v928
        %v930 = vlaneseq
        %v931 = vshrl.u32 %v930, 7
        %v932 = vsub.s32 7, %v931
        %v933 = vrot.slane %v243, %v932
        %v934 = vlaneseq
        %v935 = vshrl.u32 %v934, 7
        %v936 = vsub.s32 7, %v935
        %v937 = vrot.slane %v244, %v936
        %v938 = vlaneseq
        %v939 = vshrl.u32 %v938, 7
        %v940 = vsub.s32 7, %v939
        %v941 = vrot.slane %v245, %v940
        %v942 = vlaneseq
        %v943 = vshrl.u32 %v942, 7
        %v944 = vsub.s32 7, %v943
        %v945 = vrot.slane %v246, %v944
        %v946 = vlaneseq
        %v947 = vshrl.u32 %v946, 7
        %v948 = vsub.s32 7, %v947
        %v949 = vrot.slane %v247, %v948
        %v950 = vsel %vm910, %v921, 0.0
        %v951 = vsel %vm911, %v925, 0.0
        %v952 = vsel %vm912, %v929, 0.0
        %v953 = vsel %vm913, %v933, 0.0
        %v954 = vsel %vm914, %v937, 0.0
        %v955 = vsel %vm915, %v941, 0.0
        %v956 = vsel %vm916, %v945, 0.0
        %v957 = vsel %vm917, %v949, 0.0
        %958 = vst.msk [vmem:[%s234 + $0xe] sm:$0x3] %vm341, %v950
        %959 = vst.msk [vmem:[%s234 + $0x1e] sm:$0x3] %vm341, %v951
        %960 = vst.msk [vmem:[%s234 + $0x2e] sm:$0x3] %vm341, %v952
        %961 = vst.msk [vmem:[%s234 + $0x3e] sm:$0x3] %vm341, %v953
        %962 = vst.msk [vmem:[%s234 + $0x4e] sm:$0x3] %vm341, %v954
        %963 = vst.msk [vmem:[%s234 + $0x5e] sm:$0x3] %vm341, %v955
        %964 = vst.msk [vmem:[%s234 + $0x6e] sm:$0x3] %vm341, %v956
        %965 = vst.msk [vmem:[%s234 + $0x7e] sm:$0x3] %vm341, %v957
        %s966 = sand.u32 %s111, 1
        %s967 = scalar_lea.sflag [#allocation4], %s966
        %s968 = sand.u32 %s111, 1
        %s969 = smul.addr %s968, 128
        %s970 = scalar_lea.vmem [#allocation7], %s969
        // Predicated region
        $region37: #{tpu_custom_call.1} parent=27 // pred_check
          %p971 = pneg %p121
        $region38: #{tpu_custom_call.1} parent=27 // pred_check_branch
          %973 = sbr.rel (%p971) target = $region40
        $region39: #{tpu_custom_call.1} parent=27 // pred_region
          #allocation9 [shape = 'u32[6]{0}', space=smem, size = 0x18, scoped, tag = 'DMA stride descriptor']
          %s974 = smul.u32 %s28, 2
          %s975 = sadd.s32 %s974, %s29
          %s976 = smul.u32 8, %s27
          %s978 = ssub.s32 2048, 2048
          %979 = vsyncadd %s967, %s978
          %s980 = smul.addr %s975, 2
          %s981 = smul.addr %s976, 32
          %s982 = sadd.s32 %s980, %s981
          %s983 = smul.addr %s982, 128
          %s984 = scalar_lea.hbm %s2, %s983
          %s986 = sshll.u32 1, 14
          %s987 = sxor.u32 4294967295, %s986
          %s990 = sshll.u32 7, 18
          %s991 = sxor.u32 4294967295, %s990
          %s992 = sand.u32 0, %s991
          %s994 = sor.u32 %s992, 0
          %s996 = sshll.u32 3, 24
          %s997 = sxor.u32 4294967295, %s996
          %s998 = sand.u32 %s994, %s997
          %s1000 = sor.u32 %s998, 0
          %s1001 = sshll.u32 %s970, 4
          %s1002 = int_to_ptr.vmem [resolvable:$true] %s1001
          %1008 = sst [smem:[#allocation9]] 256
          %s1009 = scalar_lea.smem [#allocation9], 1
          %1010 = sst [smem:[%s1009]] 4096
          %s1011 = scalar_lea.smem [#allocation9], 2
          %1012 = sst [smem:[%s1011]] 2
          %s1013 = scalar_lea.smem [#allocation9], 3
          %1014 = sst [smem:[%s1013]] 128
          %s1015 = scalar_lea.smem [#allocation9], 4
          %1016 = sst [smem:[%s1015]] 128
          %s1017 = scalar_lea.smem [#allocation9], 5
          %1018 = sst [smem:[%s1017]] 8
          %1020 = dma.general %s1002, 2048, %s984, %s967, [#allocation8], [#allocation9], %s1000, 0
        $region40: #{tpu_custom_call.1} parent=27 // pred_fallthru
          _
      $region28: #{tpu_custom_call.1} parent=5 // pred_fallthru
        _
      %p1021 = scmp.le.s32.totalorder 2, %s17
      // Predicated region
      $region41: #{tpu_custom_call.1} parent=5 // pred_check
        %p1022 = pneg %p1021
      $region42: #{tpu_custom_call.1} parent=5 // pred_check_branch
        %1024 = sbr.rel (%p1022) target = $region44
      $region43: #{tpu_custom_call.1} parent=5 // pred_region
        %s1025 = ssub.s32 %s17, 2
        // Predicated region
        $region45: #{tpu_custom_call.1} parent=43 // pred_check
          %p1026 = pneg %p127
        $region46: #{tpu_custom_call.1} parent=43 // pred_check_branch
          %1028 = sbr.rel (%p1026) target = $region48
        $region47: #{tpu_custom_call.1} parent=43 // pred_region
          %s1029 = sand.u32 %s112, 1
          %s1030 = scalar_lea.sflag [#allocation4], %s1029
          %s1031 = sand.u32 %s112, 1
          %s1032 = smul.addr %s1031, 128
          %s1033 = scalar_lea.vmem [#allocation7], %s1032
          %1034 = dma.done %s1030, 2048
        $region48: #{tpu_custom_call.1} parent=43 // pred_fallthru
          _
      $region44: #{tpu_custom_call.1} parent=5 // pred_fallthru
        _
    $region6: #{tpu_custom_call.1} parent=1 // loop_footer
      %s21 = sadd.s32 1, %s17
    $region7: #{tpu_custom_call.1} parent=1 // loop_footer_branch
      %16 = sbr.rel target = $region3
    $region8: #{tpu_custom_call.1} parent=1 // loop_exit
      _
    %1035 = vsyncpa [#allocation3], 1
    %s1036 = scalar_lea.sflag [#allocation3], 1
    %1037 = vsyncpa %s1036, 1
    %1038 = vsyncpa [#allocation6], 1
    %s1039 = scalar_lea.sflag [#allocation6], 1
    %1040 = vsyncpa %s1039, 1
    %1041 = vsyncpa [#allocation4], 1
    %s1042 = scalar_lea.sflag [#allocation4], 1
    %1043 = vsyncpa %s1042, 1

</llo_original>
